<compile_context>
chip_gen: v5e
topology: v5e:2x2
jax: 0.10.0
libtpu: 0.0.40
codegen_flags: <defaults>
</compile_context>

<pallas_src>
import jax
import jax.numpy as jnp
from jax.experimental import pallas as pl
from jax.experimental.pallas import tpu as pltpu


def _round_up(a: int, b: int) -> int:
    return ((a + b - 1) // b) * b


# --------------------------------------------------------------------------- #
# Kernel: out[i, :] = PReLU( sum_k adj[i, k] @ xw[k, :] + bias )
# Grid = (row_tiles, k_tiles); accumulator is a VMEM f32 scratch resident
# across the trailing k axis.
# --------------------------------------------------------------------------- #
def gcn_agg_prelu_kernel(adj_ref, xw_ref, b_ref, a_ref, out_ref, acc_ref):
    k = pl.program_id(1)

    @pl.when(k == 0)
    def _init():
        acc_ref[...] = jnp.zeros_like(acc_ref)

    # MXU matmul; bf16 (or f32) operands, f32 accumulation.
    acc_ref[...] += jnp.dot(
        adj_ref[...], xw_ref[...], preferred_element_type=jnp.float32
    )

    @pl.when(k == pl.num_programs(1) - 1)
    def _finalize():
        # f32 epilogue (bias + per-channel PReLU), applied once per output tile.
        h = acc_ref[...] + b_ref[...]
        out_ref[...] = jnp.where(h > 0.0, h, a_ref[...] * h).astype(out_ref.dtype)


# --------------------------------------------------------------------------- #
# Graph glue (plain JAX): dense symmetric GCN normalization with self-loops.
# Diagonal is SET to 1 (matches PyG's add_remaining_self_loops: existing
# self-loops are not double counted).
# --------------------------------------------------------------------------- #
def _gcn_norm_dense(edge_index, num_nodes):
    n = num_nodes
    # message flows source -> target:  adj[target, source] = 1
    adj = (
        jnp.zeros((n, n), jnp.float32)
        .at[edge_index[1], edge_index[0]]
        .set(1.0)
    )
    diag = jnp.arange(n)
    adj = adj.at[diag, diag].set(1.0)
    deg = adj.sum(axis=1)
    dinv = jnp.where(deg > 0, 1.0 / jnp.sqrt(deg), 0.0)
    return dinv[:, None] * adj * dinv[None, :]  # D^{-1/2} (A+I) D^{-1/2}


# --------------------------------------------------------------------------- #
# Wrapper
# --------------------------------------------------------------------------- #
def encoder_forward(
    x,
    edge_index,
    weight,
    bias,
    alpha,
    *,
    tm: int = 512,
    tk: int = 1024,
    compute_dtype=jnp.bfloat16,
):
    """x: [N, C_in], edge_index: [2, E] i32, weight: [C_in, H], bias: [H],
    alpha: [H]  ->  [N, H] f32"""
    N, _ = x.shape
    H = weight.shape[1]

    # --- glue (plain JAX) ---
    adj_norm = _gcn_norm_dense(edge_index, N)                      # [N, N] f32
    xw = jnp.dot(x.astype(jnp.float32), weight.astype(jnp.float32))  # [N, H] f32

    # --- padding / tile plan ---
    Hp = _round_up(max(H, 128), 128)            # lane-dense output last dim
    Np0 = _round_up(N, 128)
    assert tk % tm == 0, "tm must divide tk"
    if Np0 <= tk:
        tm_eff = tk_eff = Np0                   # small graph: single tile per axis
        Np = Np0
    else:
        tm_eff, tk_eff = tm, tk
        Np = _round_up(Np0, tk)

    adj_p = (
        jnp.zeros((Np, Np), compute_dtype)
        .at[:N, :N]
        .set(adj_norm.astype(compute_dtype))
    )
    xw_p = (
        jnp.zeros((Np, Hp), compute_dtype)
        .at[:N, :H]
        .set(xw.astype(compute_dtype))
    )
    b_p = jnp.zeros((1, Hp), jnp.float32).at[0, :H].set(bias.astype(jnp.float32))
    a_p = jnp.zeros((1, Hp), jnp.float32).at[0, :H].set(alpha.astype(jnp.float32))

    grid = (Np // tm_eff, Np // tk_eff)

    out_p = pl.pallas_call(
        gcn_agg_prelu_kernel,
        out_shape=jax.ShapeDtypeStruct((Np, Hp), jnp.float32),
        grid_spec=pltpu.PrefetchScalarGridSpec(
            num_scalar_prefetch=0,
            grid=grid,
            in_specs=[
                pl.BlockSpec((tm_eff, tk_eff), lambda i, k: (i, k)),  # adj tile
                pl.BlockSpec((tk_eff, Hp), lambda i, k: (k, 0)),      # xw tile
                pl.BlockSpec((1, Hp), lambda i, k: (0, 0)),           # bias
                pl.BlockSpec((1, Hp), lambda i, k: (0, 0)),           # alpha
            ],
            out_specs=pl.BlockSpec((tm_eff, Hp), lambda i, k: (i, 0)),
            scratch_shapes=[pltpu.VMEM((tm_eff, Hp), jnp.float32)],
        ),
        compiler_params=pltpu.CompilerParams(
            dimension_semantics=("parallel", "arbitrary"),
            vmem_limit_bytes=32 * 1024 * 1024,
        ),
    )(adj_p, xw_p, b_p, a_p)

    return out_p[:N, :H]


# --------------------------------------------------------------------------- #
# Pure-JAX reference (identical semantics) for sanity checking.
# --------------------------------------------------------------------------- #
def reference_forward(x, edge_index, weight, bias, alpha):
    N = x.shape[0]
    adj_norm = _gcn_norm_dense(edge_index, N)
    xw = jnp.dot(
        x.astype(jnp.float32),
        weight.astype(jnp.float32),
        precision=jax.lax.Precision.HIGHEST,
    )
    h = (
        jnp.dot(adj_norm, xw, precision=jax.lax.Precision.HIGHEST)
        + bias[None, :]
    )
    return jnp.where(h > 0, h, alpha[None, :] * h)


if __name__ == "__main__":
    key = jax.random.PRNGKey(0)
    N, C_IN, HIDDEN = 16, 8, 32

    k_x, k_w = jax.random.split(key, 2)

    # deterministic node features
    x = jax.random.normal(k_x, (N, C_IN), jnp.float32)

    # deterministic small graph: bidirectional ring  (E = 2N edges)
    src = jnp.arange(N, dtype=jnp.int32)
    dst = (src + 1) % N
    edge_index = jnp.concatenate(
        [jnp.stack([src, dst], axis=0), jnp.stack([dst, src], axis=0)], axis=1
    )  # [2, 2N]

    # deterministic parameters (GCNConv weight; zero bias; PReLU default 0.25)
    limit = jnp.sqrt(6.0 / (C_IN + HIDDEN))
    weight = jax.random.uniform(k_w, (C_IN, HIDDEN), jnp.float32, -limit, limit)
    bias = jnp.zeros((HIDDEN,), jnp.float32)
    alpha = jnp.full((HIDDEN,), 0.25, jnp.float32)

    ref = reference_forward(x, edge_index, weight, bias, alpha)

    # fast path: bf16 streamed operands, f32 accumulation
    out_bf16 = encoder_forward(
        x, edge_index, weight, bias, alpha, compute_dtype=jnp.bfloat16
    )
    out_bf16 = jax.block_until_ready(out_bf16)
    assert out_bf16.shape == (N, HIDDEN)
    assert jnp.allclose(out_bf16, ref, atol=5e-2, rtol=5e-2)

    # f32 path: validates kernel structure/semantics tightly
    out_f32 = encoder_forward(
        x, edge_index, weight, bias, alpha, compute_dtype=jnp.float32
    )
    out_f32 = jax.block_until_ready(out_f32)
    assert jnp.allclose(out_f32, ref, atol=1e-3, rtol=1e-3)

    print("KERNEL_OK")
</pallas_src>

<mosaic_0001>
module attributes {stable_mosaic.version = 11 : i64} {
  func.func @gcn_agg_prelu_kernel(%arg0: i32, %arg1: i32, %arg2: memref<128x128xbf16, #tpu.memory_space<vmem>>, %arg3: memref<128x128xbf16, #tpu.memory_space<vmem>>, %arg4: memref<1x128xf32, #tpu.memory_space<vmem>>, %arg5: memref<1x128xf32, #tpu.memory_space<vmem>>, %arg6: memref<128x128xf32, #tpu.memory_space<vmem>>, %arg7: memref<128x128xf32, #tpu.memory_space<vmem>>) attributes {dimension_semantics = [#tpu.dimension_semantics<parallel>, #tpu.dimension_semantics<arbitrary>], iteration_bounds = array<i64: 1, 1>, scalar_prefetch = 0 : i64, scratch_operands = 1 : i64, tpu.core_type = #tpu.core_type<tc>, window_params = [{transform_indices = @transform_0, window_bounds = array<i64: 128, 128>}, {transform_indices = @transform_1, window_bounds = array<i64: 128, 128>}, {pipeline_mode = #tpu.pipeline_mode<synchronous>, transform_indices = @transform_2, window_bounds = array<i64: 1, 128>}, {pipeline_mode = #tpu.pipeline_mode<synchronous>, transform_indices = @transform_3, window_bounds = array<i64: 1, 128>}, {transform_indices = @transform_4, window_bounds = array<i64: 128, 128>}]} {
    %c0_i32 = arith.constant 0 : i32
    %0 = arith.cmpi eq, %arg1, %c0_i32 : i32
    %1 = arith.extui %0 : i1 to i32
    %c0_i32_0 = arith.constant 0 : i32
    %2 = arith.cmpi ne, %1, %c0_i32_0 : i32
    scf.if %2 {
      %cst_10 = arith.constant 0.000000e+00 : f32
      %12 = vector.broadcast %cst_10 : f32 to vector<128x128xf32>
      %c0_11 = arith.constant 0 : index
      %c0_12 = arith.constant 0 : index
      %13 = vector.load %arg7[%c0_11, %c0_12] : memref<128x128xf32, #tpu.memory_space<vmem>>, vector<128x128xf32>
      tpu.vector_store %arg7[%c0_11, %c0_12], %12 {strides = array<i32>} : memref<128x128xf32, #tpu.memory_space<vmem>>, vector<128x128xf32>,
    } else {
    }
    %c0 = arith.constant 0 : index
    %c0_1 = arith.constant 0 : index
    %3 = vector.load %arg7[%c0, %c0_1] : memref<128x128xf32, #tpu.memory_space<vmem>>, vector<128x128xf32>
    %c0_2 = arith.constant 0 : index
    %c0_3 = arith.constant 0 : index
    %4 = vector.load %arg2[%c0_2, %c0_3] : memref<128x128xbf16, #tpu.memory_space<vmem>>, vector<128x128xbf16>
    %c0_4 = arith.constant 0 : index
    %c0_5 = arith.constant 0 : index
    %5 = vector.load %arg3[%c0_4, %c0_5] : memref<128x128xbf16, #tpu.memory_space<vmem>>, vector<128x128xbf16>
    %cst = arith.constant dense<0.000000e+00> : vector<128x128xf32>
    %6 = tpu.matmul %4, %5, %cst {dimension_numbers = #tpu.dot_dimension_numbers<[1], [0], [0], [1], [0, 0, 1, 1], [], []>} : vector<128x128xbf16>, vector<128x128xbf16>, vector<128x128xf32> -> vector<128x128xf32>
    %7 = arith.addf %3, %6 : vector<128x128xf32>
    %c0_6 = arith.constant 0 : index
    %c0_7 = arith.constant 0 : index
    %8 = vector.load %arg7[%c0_6, %c0_7] : memref<128x128xf32, #tpu.memory_space<vmem>>, vector<128x128xf32>
    tpu.vector_store %arg7[%c0_6, %c0_7], %7 {strides = array<i32>} : memref<128x128xf32, #tpu.memory_space<vmem>>, vector<128x128xf32>,
    %c0_i32_8 = arith.constant 0 : i32
    %9 = arith.cmpi eq, %arg1, %c0_i32_8 : i32
    %10 = arith.extui %9 : i1 to i32
    %c0_i32_9 = arith.constant 0 : i32
    %11 = arith.cmpi ne, %10, %c0_i32_9 : i32
    scf.if %11 {
      %c0_10 = arith.constant 0 : index
      %c0_11 = arith.constant 0 : index
      %12 = vector.load %arg7[%c0_10, %c0_11] : memref<128x128xf32, #tpu.memory_space<vmem>>, vector<128x128xf32>
      %c0_12 = arith.constant 0 : index
      %c0_13 = arith.constant 0 : index
      %13 = vector.load %arg4[%c0_12, %c0_13] : memref<1x128xf32, #tpu.memory_space<vmem>>, vector<1x128xf32>
      %14 = vector.broadcast %13 : vector<1x128xf32> to vector<128x128xf32>
      %15 = arith.addf %12, %14 : vector<128x128xf32>
      %cst_14 = arith.constant 0.000000e+00 : f32
      %16 = vector.broadcast %cst_14 : f32 to vector<128x128xf32>
      %17 = arith.cmpf ogt, %15, %16 : vector<128x128xf32>
      %c0_15 = arith.constant 0 : index
      %c0_16 = arith.constant 0 : index
      %18 = vector.load %arg5[%c0_15, %c0_16] : memref<1x128xf32, #tpu.memory_space<vmem>>, vector<1x128xf32>
      %19 = vector.broadcast %18 : vector<1x128xf32> to vector<128x128xf32>
      %20 = arith.mulf %19, %15 : vector<128x128xf32>
      %21 = arith.select %17, %15, %20 : vector<128x128xi1>, vector<128x128xf32>
      %c0_17 = arith.constant 0 : index
      %c0_18 = arith.constant 0 : index
      %22 = vector.load %arg6[%c0_17, %c0_18] : memref<128x128xf32, #tpu.memory_space<vmem>>, vector<128x128xf32>
      tpu.vector_store %arg6[%c0_17, %c0_18], %21 {strides = array<i32>} : memref<128x128xf32, #tpu.memory_space<vmem>>, vector<128x128xf32>,
    } else {
    }
    return
  }
  func.func @transform_0(%arg0: i32, %arg1: i32) -> (i32, i32) {
    %c0_i32 = arith.constant 0 : i32
    return %arg0, %arg1 : i32, i32
  }
  func.func @transform_1(%arg0: i32, %arg1: i32) -> (i32, i32) {
    %c0_i32 = arith.constant 0 : i32
    %c0_i32_0 = arith.constant 0 : i32
    return %arg1, %c0_i32 : i32, i32
  }
  func.func @transform_2(%arg0: i32, %arg1: i32) -> (i32, i32) {
    %c0_i32 = arith.constant 0 : i32
    %c0_i32_0 = arith.constant 0 : i32
    %c0_i32_1 = arith.constant 0 : i32
    return %c0_i32, %c0_i32_0 : i32, i32
  }
  func.func @transform_3(%arg0: i32, %arg1: i32) -> (i32, i32) {
    %c0_i32 = arith.constant 0 : i32
    %c0_i32_0 = arith.constant 0 : i32
    %c0_i32_1 = arith.constant 0 : i32
    return %c0_i32, %c0_i32_0 : i32, i32
  }
  func.func @transform_4(%arg0: i32, %arg1: i32) -> (i32, i32) {
    %c0_i32 = arith.constant 0 : i32
    %c0_i32_0 = arith.constant 0 : i32
    return %arg0, %c0_i32 : i32, i32
  }
}

</mosaic_0001>

<llo_original>
// kernel: tpu_custom_call.1
$region0: #{tpu_custom_call.1}
  #allocation0 [shape = 'u32[]', space=smem, size = 0x4, offset = 0x4, fixed_abs, tag = 'smem constant byte address 0x4 - core index']
  #allocation1 [shape = 'u32[72,128]{1,0:T(1,128)}', space=vmem, size = 0x9000, scoped, tag = 'internal scratch']
  #allocation2 [shape = 'f32[128,128]{1,0:T(8,128)}', space=vmem, size = 0x10000, scoped, tag = 'scratch operand']
  %s0 = inlined_call_operand.hbm [shape: bf16[128,128], index: 0, kind: input, shape index: {}]
  %s1 = inlined_call_operand.hbm [shape: bf16[128,128], index: 1, kind: input, shape index: {}]
  %s2 = inlined_call_operand.vmem [shape: f32[1,128], index: 2, kind: input, shape index: {}]
  %s3 = inlined_call_operand.vmem [shape: f32[1,128], index: 3, kind: input, shape index: {}]
  %s4 = inlined_call_operand.hbm [shape: f32[128,128], index: 4, kind: output, shape index: {}]
  %s5 = sld [smem:[#allocation0]]
  $region42: #{tpu_custom_call.1} parent=0
    _
  %s7 = ssub.s32 1, %s5
  %s8 = scalar_select 0, %s7, %s5
  $region1: #{tpu_custom_call.1} parent=0
    #allocation3 [shape = 'u8[32768]{0}', space=vmem, size = 0x8000, scoped, tag = 'input window, operand 0, single buffered']
    #allocation4 [shape = 's32[1]{0}', space=sflag, size = 0x4, scoped, tag = 'scoped memory for tpu_custom_call.1']
    #allocation5 [shape = 's32[1]{0}', space=sflag, size = 0x4, scoped, tag = 'scoped memory for tpu_custom_call.1']
    #allocation6 [shape = 'u8[32768]{0}', space=vmem, size = 0x8000, scoped, tag = 'input window, operand 1, single buffered']
    #allocation7 [shape = 's32[1]{0}', space=sflag, size = 0x4, scoped, tag = 'scoped memory for tpu_custom_call.1']
    #allocation8 [shape = 'u8[65536]{0}', space=vmem, size = 0x10000, scoped, tag = 'output window, operand 0, single buffered']
    %9 = vsyncpa [#allocation4], 0
    %10 = vsyncpa [#allocation7], 0
    %11 = vsyncpa [#allocation5], 0
    // Predicated region
    $region2: #{tpu_custom_call.1} parent=1 // pred_check
      _
    $region3: #{tpu_custom_call.1} parent=1 // pred_check_branch
      %13 = sbr.rel (0) target = $region5
    $region4: #{tpu_custom_call.1} parent=1 // pred_region
      %15 = vsyncadd [#allocation4], 0
      %s16 = sshll.u32 %s0, 4
      %s17 = int_to_ptr.hbm [resolvable:$true] %s16
      %s18 = sshll.u32 [#allocation3], 4
      %s19 = int_to_ptr.vmem [resolvable:$true] %s18
      %24 = dma.hbm_to_vmem [thread:$0]  %s17, 1024, %s19, [#allocation4], 64, 64, 4
    $region5: #{tpu_custom_call.1} parent=1 // pred_fallthru
      _
    // Predicated region
    $region6: #{tpu_custom_call.1} parent=1 // pred_check
      _
    $region7: #{tpu_custom_call.1} parent=1 // pred_check_branch
      %26 = sbr.rel (0) target = $region9
    $region8: #{tpu_custom_call.1} parent=1 // pred_region
      %28 = vsyncadd [#allocation7], 0
      %s29 = sshll.u32 %s1, 4
      %s30 = int_to_ptr.hbm [resolvable:$true] %s29
      %s31 = sshll.u32 [#allocation6], 4
      %s32 = int_to_ptr.vmem [resolvable:$true] %s31
      %37 = dma.hbm_to_vmem [thread:$0]  %s30, 1024, %s32, [#allocation7], 64, 64, 4
    $region9: #{tpu_custom_call.1} parent=1 // pred_fallthru
      _
    // Predicated region
    $region10: #{tpu_custom_call.1} parent=1 // pred_check
      _
    $region11: #{tpu_custom_call.1} parent=1 // pred_check_branch
      %39 = sbr.rel (0) target = $region13
    $region12: #{tpu_custom_call.1} parent=1 // pred_region
      _
    $region13: #{tpu_custom_call.1} parent=1 // pred_fallthru
      _
    // Predicated region
    $region14: #{tpu_custom_call.1} parent=1 // pred_check
      _
    $region15: #{tpu_custom_call.1} parent=1 // pred_check_branch
      %41 = sbr.rel (0) target = $region17
    $region16: #{tpu_custom_call.1} parent=1 // pred_region
      _
    $region17: #{tpu_custom_call.1} parent=1 // pred_fallthru
      _
    // Predicated region
    $region18: #{tpu_custom_call.1} parent=1 // pred_check
      _
    $region19: #{tpu_custom_call.1} parent=1 // pred_check_branch
      %43 = sbr.rel (0) target = $region21
    $region20: #{tpu_custom_call.1} parent=1 // pred_region
      %45 = dma.done [#allocation4], 1024
    $region21: #{tpu_custom_call.1} parent=1 // pred_fallthru
      _
    // Predicated region
    $region22: #{tpu_custom_call.1} parent=1 // pred_check
      _
    $region23: #{tpu_custom_call.1} parent=1 // pred_check_branch
      %47 = sbr.rel (0) target = $region25
    $region24: #{tpu_custom_call.1} parent=1 // pred_region
      %49 = dma.done [#allocation7], 1024
    $region25: #{tpu_custom_call.1} parent=1 // pred_fallthru
      _
    %p50 = scmp.eq.s32.totalorder 0, 0
    // Predicated region
    $region26: #{tpu_custom_call.1} parent=1 // pred_check
      %p51 = pneg %p50
    $region27: #{tpu_custom_call.1} parent=1 // pred_check_branch
      %53 = sbr.rel (%p51) target = $region29
    $region28: #{tpu_custom_call.1} parent=1 // pred_region
      %54 = vst [vmem:[#allocation2] sm:$0xff] 0.0
      %55 = vst [vmem:[#allocation2 + $0x8] sm:$0xff] 0.0
      %56 = vst [vmem:[#allocation2 + $0x10] sm:$0xff] 0.0
      %57 = vst [vmem:[#allocation2 + $0x18] sm:$0xff] 0.0
      %58 = vst [vmem:[#allocation2 + $0x20] sm:$0xff] 0.0
      %59 = vst [vmem:[#allocation2 + $0x28] sm:$0xff] 0.0
      %60 = vst [vmem:[#allocation2 + $0x30] sm:$0xff] 0.0
      %61 = vst [vmem:[#allocation2 + $0x38] sm:$0xff] 0.0
      %62 = vst [vmem:[#allocation2 + $0x40] sm:$0xff] 0.0
      %63 = vst [vmem:[#allocation2 + $0x48] sm:$0xff] 0.0
      %64 = vst [vmem:[#allocation2 + $0x50] sm:$0xff] 0.0
      %65 = vst [vmem:[#allocation2 + $0x58] sm:$0xff] 0.0
      %66 = vst [vmem:[#allocation2 + $0x60] sm:$0xff] 0.0
      %67 = vst [vmem:[#allocation2 + $0x68] sm:$0xff] 0.0
      %68 = vst [vmem:[#allocation2 + $0x70] sm:$0xff] 0.0
      %69 = vst [vmem:[#allocation2 + $0x78] sm:$0xff] 0.0
    $region29: #{tpu_custom_call.1} parent=1 // pred_fallthru
      _
    %v70 = vld [vmem:[#allocation2] sm:$0xff]
    %v71 = vld [vmem:[#allocation2 + $0x8] sm:$0xff]
    %v72 = vld [vmem:[#allocation2 + $0x10] sm:$0xff]
    %v73 = vld [vmem:[#allocation2 + $0x18] sm:$0xff]
    %v74 = vld [vmem:[#allocation2 + $0x20] sm:$0xff]
    %v75 = vld [vmem:[#allocation2 + $0x28] sm:$0xff]
    %v76 = vld [vmem:[#allocation2 + $0x30] sm:$0xff]
    %v77 = vld [vmem:[#allocation2 + $0x38] sm:$0xff]
    %v78 = vld [vmem:[#allocation2 + $0x40] sm:$0xff]
    %v79 = vld [vmem:[#allocation2 + $0x48] sm:$0xff]
    %v80 = vld [vmem:[#allocation2 + $0x50] sm:$0xff]
    %v81 = vld [vmem:[#allocation2 + $0x58] sm:$0xff]
    %v82 = vld [vmem:[#allocation2 + $0x60] sm:$0xff]
    %v83 = vld [vmem:[#allocation2 + $0x68] sm:$0xff]
    %v84 = vld [vmem:[#allocation2 + $0x70] sm:$0xff]
    %v85 = vld [vmem:[#allocation2 + $0x78] sm:$0xff]
    %v86 = vld [vmem:[#allocation3] sm:$0xf]
    %v87 = vld [vmem:[#allocation3 + $0x4] sm:$0xf]
    %v88 = vld [vmem:[#allocation3 + $0x8] sm:$0xf]
    %v89 = vld [vmem:[#allocation3 + $0xc] sm:$0xf]
    %v90 = vld [vmem:[#allocation3 + $0x10] sm:$0xf]
    %v91 = vld [vmem:[#allocation3 + $0x14] sm:$0xf]
    %v92 = vld [vmem:[#allocation3 + $0x18] sm:$0xf]
    %v93 = vld [vmem:[#allocation3 + $0x1c] sm:$0xf]
    %v94 = vld [vmem:[#allocation3 + $0x20] sm:$0xf]
    %v95 = vld [vmem:[#allocation3 + $0x24] sm:$0xf]
    %v96 = vld [vmem:[#allocation3 + $0x28] sm:$0xf]
    %v97 = vld [vmem:[#allocation3 + $0x2c] sm:$0xf]
    %v98 = vld [vmem:[#allocation3 + $0x30] sm:$0xf]
    %v99 = vld [vmem:[#allocation3 + $0x34] sm:$0xf]
    %v100 = vld [vmem:[#allocation3 + $0x38] sm:$0xf]
    %v101 = vld [vmem:[#allocation3 + $0x3c] sm:$0xf]
    %v102 = vld [vmem:[#allocation6] sm:$0xf]
    %v103 = vld [vmem:[#allocation6 + $0x4] sm:$0xf]
    %v104 = vld [vmem:[#allocation6 + $0x8] sm:$0xf]
    %v105 = vld [vmem:[#allocation6 + $0xc] sm:$0xf]
    %v106 = vld [vmem:[#allocation6 + $0x10] sm:$0xf]
    %v107 = vld [vmem:[#allocation6 + $0x14] sm:$0xf]
    %v108 = vld [vmem:[#allocation6 + $0x18] sm:$0xf]
    %v109 = vld [vmem:[#allocation6 + $0x1c] sm:$0xf]
    %v110 = vld [vmem:[#allocation6 + $0x20] sm:$0xf]
    %v111 = vld [vmem:[#allocation6 + $0x24] sm:$0xf]
    %v112 = vld [vmem:[#allocation6 + $0x28] sm:$0xf]
    %v113 = vld [vmem:[#allocation6 + $0x2c] sm:$0xf]
    %v114 = vld [vmem:[#allocation6 + $0x30] sm:$0xf]
    %v115 = vld [vmem:[#allocation6 + $0x34] sm:$0xf]
    %v116 = vld [vmem:[#allocation6 + $0x38] sm:$0xf]
    %v117 = vld [vmem:[#allocation6 + $0x3c] sm:$0xf]
    %v134 = vunpack.c.l.b16 %v86
    %v135 = vunpack.c.l.b16 %v87
    %v136 = vunpack.c.l.b16 %v88
    %v137 = vunpack.c.l.b16 %v89
    %v138 = vunpack.c.l.b16 %v90
    %v139 = vunpack.c.l.b16 %v91
    %v140 = vunpack.c.l.b16 %v92
    %v141 = vunpack.c.l.b16 %v93
    %v142 = vunpack.c.l.b16 %v94
    %v143 = vunpack.c.l.b16 %v95
    %v144 = vunpack.c.l.b16 %v96
    %v145 = vunpack.c.l.b16 %v97
    %v146 = vunpack.c.l.b16 %v98
    %v147 = vunpack.c.l.b16 %v99
    %v148 = vunpack.c.l.b16 %v100
    %v149 = vunpack.c.l.b16 %v101
    %v150 = vpack.c.b16 %v135, %v134
    %v151 = vpack.c.b16 %v137, %v136
    %v152 = vpack.c.b16 %v139, %v138
    %v153 = vpack.c.b16 %v141, %v140
    %v154 = vpack.c.b16 %v143, %v142
    %v155 = vpack.c.b16 %v145, %v144
    %v156 = vpack.c.b16 %v147, %v146
    %v157 = vpack.c.b16 %v149, %v148
    %v182 = vunpack.c.l.b16 %v102
    %v183 = vunpack.c.l.b16 %v103
    %v184 = vunpack.c.l.b16 %v104
    %v185 = vunpack.c.l.b16 %v105
    %v186 = vunpack.c.l.b16 %v106
    %v187 = vunpack.c.l.b16 %v107
    %v188 = vunpack.c.l.b16 %v108
    %v189 = vunpack.c.l.b16 %v109
    %v190 = vunpack.c.l.b16 %v110
    %v191 = vunpack.c.l.b16 %v111
    %v192 = vunpack.c.l.b16 %v112
    %v193 = vunpack.c.l.b16 %v113
    %v194 = vunpack.c.l.b16 %v114
    %v195 = vunpack.c.l.b16 %v115
    %v196 = vunpack.c.l.b16 %v116
    %v197 = vunpack.c.l.b16 %v117
    %v198 = vpack.c.b16 %v183, %v182
    %v199 = vpack.c.b16 %v185, %v184
    %v200 = vpack.c.b16 %v187, %v186
    %v201 = vpack.c.b16 %v189, %v188
    %v202 = vpack.c.b16 %v191, %v190
    %v203 = vpack.c.b16 %v193, %v192
    %v204 = vpack.c.b16 %v195, %v194
    %v205 = vpack.c.b16 %v197, %v196
    %214 = vmatpush.bf16.msra.mxu0 %v205
    %215 = vmatpush.bf16.msra.mxu0 %v204
    %216 = vmatpush.bf16.msra.mxu0 %v203
    %217 = vmatpush.bf16.msra.mxu0 %v202
    %218 = vmatpush.bf16.msra.mxu0 %v201
    %219 = vmatpush.bf16.msra.mxu0 %v200
    %220 = vmatpush.bf16.msra.mxu0 %v199
    %221 = vmatpush.bf16.msra.mxu0 %v198
    %222 = vmatmul.bf16.gmra.mxu0 %v150
    %v223 = vpop.f32.mrf.mxu0
    %v224 = vadd.f32 0.0, %v223
    %v225 = vpop.f32.mrf.mxu0
    %v226 = vadd.f32 0.0, %v225
    %227 = vmatmul.bf16.gmra.mxu0 %v151
    %v228 = vpop.f32.mrf.mxu0
    %v229 = vadd.f32 0.0, %v228
    %v230 = vpop.f32.mrf.mxu0
    %v231 = vadd.f32 0.0, %v230
    %232 = vmatmul.bf16.gmra.mxu0 %v152
    %v233 = vpop.f32.mrf.mxu0
    %v234 = vadd.f32 0.0, %v233
    %v235 = vpop.f32.mrf.mxu0
    %v236 = vadd.f32 0.0, %v235
    %237 = vmatmul.bf16.gmra.mxu0 %v153
    %v238 = vpop.f32.mrf.mxu0
    %v239 = vadd.f32 0.0, %v238
    %v240 = vpop.f32.mrf.mxu0
    %v241 = vadd.f32 0.0, %v240
    %242 = vmatmul.bf16.gmra.mxu0 %v154
    %v243 = vpop.f32.mrf.mxu0
    %v244 = vadd.f32 0.0, %v243
    %v245 = vpop.f32.mrf.mxu0
    %v246 = vadd.f32 0.0, %v245
    %247 = vmatmul.bf16.gmra.mxu0 %v155
    %v248 = vpop.f32.mrf.mxu0
    %v249 = vadd.f32 0.0, %v248
    %v250 = vpop.f32.mrf.mxu0
    %v251 = vadd.f32 0.0, %v250
    %252 = vmatmul.bf16.gmra.mxu0 %v156
    %v253 = vpop.f32.mrf.mxu0
    %v254 = vadd.f32 0.0, %v253
    %v255 = vpop.f32.mrf.mxu0
    %v256 = vadd.f32 0.0, %v255
    %257 = vmatmul.bf16.gmra.mxu0 %v157
    %v258 = vpop.f32.mrf.mxu0
    %v259 = vadd.f32 0.0, %v258
    %v260 = vpop.f32.mrf.mxu0
    %v261 = vadd.f32 0.0, %v260
    %262 = vdwg.mxu0
    %v263 = vadd.f32 %v70, %v224
    %v264 = vadd.f32 %v71, %v226
    %v265 = vadd.f32 %v72, %v229
    %v266 = vadd.f32 %v73, %v231
    %v267 = vadd.f32 %v74, %v234
    %v268 = vadd.f32 %v75, %v236
    %v269 = vadd.f32 %v76, %v239
    %v270 = vadd.f32 %v77, %v241
    %v271 = vadd.f32 %v78, %v244
    %v272 = vadd.f32 %v79, %v246
    %v273 = vadd.f32 %v80, %v249
    %v274 = vadd.f32 %v81, %v251
    %v275 = vadd.f32 %v82, %v254
    %v276 = vadd.f32 %v83, %v256
    %v277 = vadd.f32 %v84, %v259
    %v278 = vadd.f32 %v85, %v261
    %279 = vst [vmem:[#allocation2] sm:$0xff] %v263
    %280 = vst [vmem:[#allocation2 + $0x8] sm:$0xff] %v264
    %281 = vst [vmem:[#allocation2 + $0x10] sm:$0xff] %v265
    %282 = vst [vmem:[#allocation2 + $0x18] sm:$0xff] %v266
    %283 = vst [vmem:[#allocation2 + $0x20] sm:$0xff] %v267
    %284 = vst [vmem:[#allocation2 + $0x28] sm:$0xff] %v268
    %285 = vst [vmem:[#allocation2 + $0x30] sm:$0xff] %v269
    %286 = vst [vmem:[#allocation2 + $0x38] sm:$0xff] %v270
    %287 = vst [vmem:[#allocation2 + $0x40] sm:$0xff] %v271
    %288 = vst [vmem:[#allocation2 + $0x48] sm:$0xff] %v272
    %289 = vst [vmem:[#allocation2 + $0x50] sm:$0xff] %v273
    %290 = vst [vmem:[#allocation2 + $0x58] sm:$0xff] %v274
    %291 = vst [vmem:[#allocation2 + $0x60] sm:$0xff] %v275
    %292 = vst [vmem:[#allocation2 + $0x68] sm:$0xff] %v276
    %293 = vst [vmem:[#allocation2 + $0x70] sm:$0xff] %v277
    %294 = vst [vmem:[#allocation2 + $0x78] sm:$0xff] %v278
    // Predicated region
    $region30: #{tpu_custom_call.1} parent=1 // pred_check
      %p295 = pneg %p50
    $region31: #{tpu_custom_call.1} parent=1 // pred_check_branch
      %297 = sbr.rel (%p295) target = $region33
    $region32: #{tpu_custom_call.1} parent=1 // pred_region
      %v298 = vld [vmem:[#allocation2] sm:$0xff]
      %v299 = vld [vmem:[#allocation2 + $0x8] sm:$0xff]
      %v300 = vld [vmem:[#allocation2 + $0x10] sm:$0xff]
      %v301 = vld [vmem:[#allocation2 + $0x18] sm:$0xff]
      %v302 = vld [vmem:[#allocation2 + $0x20] sm:$0xff]
      %v303 = vld [vmem:[#allocation2 + $0x28] sm:$0xff]
      %v304 = vld [vmem:[#allocation2 + $0x30] sm:$0xff]
      %v305 = vld [vmem:[#allocation2 + $0x38] sm:$0xff]
      %v306 = vld [vmem:[#allocation2 + $0x40] sm:$0xff]
      %v307 = vld [vmem:[#allocation2 + $0x48] sm:$0xff]
      %v308 = vld [vmem:[#allocation2 + $0x50] sm:$0xff]
      %v309 = vld [vmem:[#allocation2 + $0x58] sm:$0xff]
      %v310 = vld [vmem:[#allocation2 + $0x60] sm:$0xff]
      %v311 = vld [vmem:[#allocation2 + $0x68] sm:$0xff]
      %v312 = vld [vmem:[#allocation2 + $0x70] sm:$0xff]
      %v313 = vld [vmem:[#allocation2 + $0x78] sm:$0xff]
      %v314 = vld [vmem:[%s2] sm:$0x1]
      %v316 = vperm.slane %v314, 0
      %v318 = vadd.f32 %v298, %v316
      %v319 = vadd.f32 %v299, %v316
      %v320 = vadd.f32 %v300, %v316
      %v321 = vadd.f32 %v301, %v316
      %v322 = vadd.f32 %v302, %v316
      %v323 = vadd.f32 %v303, %v316
      %v324 = vadd.f32 %v304, %v316
      %v325 = vadd.f32 %v305, %v316
      %v326 = vadd.f32 %v306, %v316
      %v327 = vadd.f32 %v307, %v316
      %v328 = vadd.f32 %v308, %v316
      %v329 = vadd.f32 %v309, %v316
      %v330 = vadd.f32 %v310, %v316
      %v331 = vadd.f32 %v311, %v316
      %v332 = vadd.f32 %v312, %v316
      %v333 = vadd.f32 %v313, %v316
      %vm334 = vcmp.gt.f32.partialorder %v318, 0.0
      %vm335 = vcmp.gt.f32.partialorder %v319, 0.0
      %vm336 = vcmp.gt.f32.partialorder %v320, 0.0
      %vm337 = vcmp.gt.f32.partialorder %v321, 0.0
      %vm338 = vcmp.gt.f32.partialorder %v322, 0.0
      %vm339 = vcmp.gt.f32.partialorder %v323, 0.0
      %vm340 = vcmp.gt.f32.partialorder %v324, 0.0
      %vm341 = vcmp.gt.f32.partialorder %v325, 0.0
      %vm342 = vcmp.gt.f32.partialorder %v326, 0.0
      %vm343 = vcmp.gt.f32.partialorder %v327, 0.0
      %vm344 = vcmp.gt.f32.partialorder %v328, 0.0
      %vm345 = vcmp.gt.f32.partialorder %v329, 0.0
      %vm346 = vcmp.gt.f32.partialorder %v330, 0.0
      %vm347 = vcmp.gt.f32.partialorder %v331, 0.0
      %vm348 = vcmp.gt.f32.partialorder %v332, 0.0
      %vm349 = vcmp.gt.f32.partialorder %v333, 0.0
      %v350 = vld [vmem:[%s3] sm:$0x1]
      %v352 = vperm.slane %v350, 0
      %v354 = vmul.f32 %v352, %v318
      %v355 = vmul.f32 %v352, %v319
      %v356 = vmul.f32 %v352, %v320
      %v357 = vmul.f32 %v352, %v321
      %v358 = vmul.f32 %v352, %v322
      %v359 = vmul.f32 %v352, %v323
      %v360 = vmul.f32 %v352, %v324
      %v361 = vmul.f32 %v352, %v325
      %v362 = vmul.f32 %v352, %v326
      %v363 = vmul.f32 %v352, %v327
      %v364 = vmul.f32 %v352, %v328
      %v365 = vmul.f32 %v352, %v329
      %v366 = vmul.f32 %v352, %v330
      %v367 = vmul.f32 %v352, %v331
      %v368 = vmul.f32 %v352, %v332
      %v369 = vmul.f32 %v352, %v333
      %v370 = vsel %vm334, %v318, %v354
      %v371 = vsel %vm335, %v319, %v355
      %v372 = vsel %vm336, %v320, %v356
      %v373 = vsel %vm337, %v321, %v357
      %v374 = vsel %vm338, %v322, %v358
      %v375 = vsel %vm339, %v323, %v359
      %v376 = vsel %vm340, %v324, %v360
      %v377 = vsel %vm341, %v325, %v361
      %v378 = vsel %vm342, %v326, %v362
      %v379 = vsel %vm343, %v327, %v363
      %v380 = vsel %vm344, %v328, %v364
      %v381 = vsel %vm345, %v329, %v365
      %v382 = vsel %vm346, %v330, %v366
      %v383 = vsel %vm347, %v331, %v367
      %v384 = vsel %vm348, %v332, %v368
      %v385 = vsel %vm349, %v333, %v369
      %386 = vst [vmem:[#allocation8] sm:$0xff] %v370
      %387 = vst [vmem:[#allocation8 + $0x8] sm:$0xff] %v371
      %388 = vst [vmem:[#allocation8 + $0x10] sm:$0xff] %v372
      %389 = vst [vmem:[#allocation8 + $0x18] sm:$0xff] %v373
      %390 = vst [vmem:[#allocation8 + $0x20] sm:$0xff] %v374
      %391 = vst [vmem:[#allocation8 + $0x28] sm:$0xff] %v375
      %392 = vst [vmem:[#allocation8 + $0x30] sm:$0xff] %v376
      %393 = vst [vmem:[#allocation8 + $0x38] sm:$0xff] %v377
      %394 = vst [vmem:[#allocation8 + $0x40] sm:$0xff] %v378
      %395 = vst [vmem:[#allocation8 + $0x48] sm:$0xff] %v379
      %396 = vst [vmem:[#allocation8 + $0x50] sm:$0xff] %v380
      %397 = vst [vmem:[#allocation8 + $0x58] sm:$0xff] %v381
      %398 = vst [vmem:[#allocation8 + $0x60] sm:$0xff] %v382
      %399 = vst [vmem:[#allocation8 + $0x68] sm:$0xff] %v383
      %400 = vst [vmem:[#allocation8 + $0x70] sm:$0xff] %v384
      %401 = vst [vmem:[#allocation8 + $0x78] sm:$0xff] %v385
    $region33: #{tpu_custom_call.1} parent=1 // pred_fallthru
      _
    // Predicated region
    $region34: #{tpu_custom_call.1} parent=1 // pred_check
      _
    $region35: #{tpu_custom_call.1} parent=1 // pred_check_branch
      %403 = sbr.rel (0) target = $region37
    $region36: #{tpu_custom_call.1} parent=1 // pred_region
      %405 = vsyncadd [#allocation5], 0
      %s406 = sshll.u32 [#allocation8], 4
      %s407 = int_to_ptr.vmem [resolvable:$true] %s406
      %s408 = sshll.u32 %s4, 4
      %s409 = int_to_ptr.hbm [resolvable:$true] %s408
      %414 = dma.vmem_to_hbm [thread:$0]  %s407, 2048, %s409, [#allocation5], 128, 128, 8
    $region37: #{tpu_custom_call.1} parent=1 // pred_fallthru
      _
    // Predicated region
    $region38: #{tpu_custom_call.1} parent=1 // pred_check
      _
    $region39: #{tpu_custom_call.1} parent=1 // pred_check_branch
      %416 = sbr.rel (0) target = $region41
    $region40: #{tpu_custom_call.1} parent=1 // pred_region
      %418 = dma.done [#allocation5], 2048
    $region41: #{tpu_custom_call.1} parent=1 // pred_fallthru
      _
    %419 = vsyncpa [#allocation4], 1
    %420 = vsyncpa [#allocation7], 1
    %421 = vsyncpa [#allocation5], 1

</llo_original>
